<compile_context>
chip_gen: v7x
topology: tpu7x:2x2x1
jax: 0.10.0
libtpu: 0.0.40
codegen_flags: <defaults>
</compile_context>

<pallas_src>
import math
from functools import partial

import jax
import jax.numpy as jnp
from jax import lax
from jax.experimental import pallas as pl
from jax.experimental.pallas import tpu as pltpu


def _round_up(x, m):
    return (x + m - 1) // m * m


# --------------------------------------------------------------------------
# Kernel: all heads of one (batch, query-tile) per program, online softmax
# over the KV grid axis.
# --------------------------------------------------------------------------
def _mha_flash_kernel(q_ref, k_ref, v_ref, o_ref, m_sc, l_sc, acc_sc, *,
                      scale, causal, block_q, block_k, seq_len, kv_padded,
                      mxu_dtype):
    # q_ref: (1, H, BQ, dh)   k_ref/v_ref: (1, H, BK, dh)   o_ref: (1, H, BQ, dh)
    qi = pl.program_id(1)
    ki = pl.program_id(2)
    nk = pl.num_programs(2)

    q_off = qi * block_q
    k_off = ki * block_k

    @pl.when(ki == 0)
    def _init():
        m_sc[...] = jnp.full_like(m_sc, -jnp.inf)
        l_sc[...] = jnp.zeros_like(l_sc)
        acc_sc[...] = jnp.zeros_like(acc_sc)

    def process_block(apply_causal_mask):
        # Fold the softmax scale into the small q tile (not the score tensor);
        # bf16 operands to the MXU, f32 accumulation.
        q = (q_ref[0] * scale).astype(mxu_dtype)               # (H, BQ, dh)
        k = k_ref[0].astype(mxu_dtype)                          # (H, BK, dh)
        v = v_ref[0].astype(mxu_dtype)                          # (H, BK, dh)

        # Scores: contract head_dim (lane) axes directly, batched over heads.
        s = lax.dot_general(
            q, k, dimension_numbers=(((2,), (2,)), ((0,), (0,))),
            preferred_element_type=jnp.float32)                 # (H, BQ, BK)

        if apply_causal_mask or kv_padded:
            col = lax.broadcasted_iota(jnp.int32, (block_q, block_k), 1) + k_off
            mask = None
            if kv_padded:
                mask = col < seq_len
            if apply_causal_mask:
                row = (lax.broadcasted_iota(jnp.int32, (block_q, block_k), 0)
                       + q_off)
                cm = col <= row
                mask = cm if mask is None else jnp.logical_and(mask, cm)
            # finite large-negative mask value avoids inf-inf NaNs.
            s = jnp.where(mask[None, :, :], s, jnp.float32(-1e30))

        # Online (numerically stable) softmax update.
        m_prev = m_sc[...]                                      # (H, BQ, 1)
        m_new = jnp.maximum(m_prev, jnp.max(s, axis=-1, keepdims=True))
        alpha = jnp.exp(m_prev - m_new)
        p = jnp.exp(s - m_new)                                  # (H, BQ, BK) f32
        l_sc[...] = alpha * l_sc[...] + jnp.sum(p, axis=-1, keepdims=True)
        pv = lax.dot_general(
            p.astype(mxu_dtype), v,
            dimension_numbers=(((2,), (1,)), ((0,), (0,))),
            preferred_element_type=jnp.float32)                 # (H, BQ, dh) f32
        acc_sc[...] = alpha * acc_sc[...] + pv
        m_sc[...] = m_new

    if causal:
        q_last = q_off + (block_q - 1)
        k_last = k_off + (block_k - 1)
        fully_visible = k_last <= q_off          # no causal mask needed
        straddles = jnp.logical_and(k_off <= q_last, k_last > q_off)

        @pl.when(fully_visible)
        def _full():
            process_block(apply_causal_mask=False)

        @pl.when(straddles)
        def _partial():
            process_block(apply_causal_mask=True)
        # KV blocks fully above the diagonal are skipped entirely.
    else:
        process_block(apply_causal_mask=False)

    @pl.when(ki == nk - 1)
    def _finalize():
        l = l_sc[...]
        l = jnp.where(l == 0.0, jnp.float32(1.0), l)   # guard padded query rows
        o_ref[0] = (acc_sc[...] * pl.reciprocal(l, approx=False)).astype(o_ref.dtype)


# --------------------------------------------------------------------------
# Wrapper: PyTorch MHAttention.forward semantics (eval mode, attn_mask=None)
# --------------------------------------------------------------------------
def mh_attention(q, k, v, *, n_heads, is_causal=False,
                 block_q=128, block_k=128, mxu_dtype=jnp.bfloat16):
    """q, k, v: (B, T, D) with D = n_heads * head_dim  ->  (B, T, D)."""
    B, T, D = q.shape
    assert D % n_heads == 0, "embed dim must be divisible by n_heads"
    dh = D // n_heads

    # Tile sizes: never exceed the (8-aligned) sequence length; pad instead of
    # falling back to a single full-T block.
    bq = min(block_q, _round_up(T, 8))
    bk = min(block_k, _round_up(T, 8))
    t_q = _round_up(T, bq)
    t_k = _round_up(T, bk)
    num_q = t_q // bq
    num_k = t_k // bk

    def split_heads(x, t_pad):
        x = x.reshape(B, T, n_heads, dh).transpose(0, 2, 1, 3)   # (B, H, T, dh)
        if t_pad != T:
            x = jnp.pad(x, ((0, 0), (0, 0), (0, t_pad - T), (0, 0)))
        return x

    qh = split_heads(q, t_q)
    kh = split_heads(k, t_k)
    vh = split_heads(v, t_k)

    kernel = partial(
        _mha_flash_kernel,
        scale=1.0 / math.sqrt(dh), causal=is_causal,
        block_q=bq, block_k=bk, seq_len=T, kv_padded=(t_k != T),
        mxu_dtype=mxu_dtype)

    out = pl.pallas_call(
        kernel,
        out_shape=jax.ShapeDtypeStruct((B, n_heads, t_q, dh), q.dtype),
        grid=(B, num_q, num_k),
        in_specs=[
            pl.BlockSpec((1, n_heads, bq, dh), lambda b, i, j: (b, 0, i, 0)),
            pl.BlockSpec((1, n_heads, bk, dh), lambda b, i, j: (b, 0, j, 0)),
            pl.BlockSpec((1, n_heads, bk, dh), lambda b, i, j: (b, 0, j, 0)),
        ],
        out_specs=pl.BlockSpec((1, n_heads, bq, dh), lambda b, i, j: (b, 0, i, 0)),
        scratch_shapes=[
            pltpu.VMEM((n_heads, bq, 1), jnp.float32),    # running max m
            pltpu.VMEM((n_heads, bq, 1), jnp.float32),    # running sum l
            pltpu.VMEM((n_heads, bq, dh), jnp.float32),   # output accumulator
        ],
        compiler_params=pltpu.CompilerParams(
            dimension_semantics=("parallel", "parallel", "arbitrary")),
    )(qh, kh, vh)

    if t_q != T:
        out = out[:, :, :T, :]
    return out.transpose(0, 2, 1, 3).reshape(B, T, D)   # (B,H,T,dh) -> (B,T,D)


# --------------------------------------------------------------------------
# Pure-JAX reference (matches torch SDPA, eval mode)
# --------------------------------------------------------------------------
def _reference(q, k, v, n_heads, is_causal):
    B, T, D = q.shape
    dh = D // n_heads
    qh = q.reshape(B, T, n_heads, dh).transpose(0, 2, 1, 3)
    kh = k.reshape(B, T, n_heads, dh).transpose(0, 2, 1, 3)
    vh = v.reshape(B, T, n_heads, dh).transpose(0, 2, 1, 3)
    s = jnp.einsum("bhqd,bhkd->bhqk", qh, kh,
                   precision=lax.Precision.HIGHEST) / math.sqrt(dh)
    if is_causal:
        mask = jnp.tril(jnp.ones((T, T), dtype=bool))
        s = jnp.where(mask, s, -jnp.inf)
    p = jax.nn.softmax(s, axis=-1)
    o = jnp.einsum("bhqk,bhkd->bhqd", p, vh, precision=lax.Precision.HIGHEST)
    return o.transpose(0, 2, 1, 3).reshape(B, T, D)


if __name__ == "__main__":
    N_HEADS = 4          # PyTorch module default
    HEAD_DIM = 128       # lane-dense per-head blocks
    D = N_HEADS * HEAD_DIM

    # --- small single-tile case (module-scale shapes) ----------------------
    B, T = 2, 16
    kq, kk, kv = jax.random.split(jax.random.PRNGKey(0), 3)
    q = jax.random.normal(kq, (B, T, D), dtype=jnp.float32)
    k = jax.random.normal(kk, (B, T, D), dtype=jnp.float32)
    v = jax.random.normal(kv, (B, T, D), dtype=jnp.float32)

    out = jax.jit(partial(mh_attention, n_heads=N_HEADS, is_causal=False))(q, k, v)
    out_c = jax.jit(partial(mh_attention, n_heads=N_HEADS, is_causal=True))(q, k, v)
    jax.block_until_ready((out, out_c))

    ref = _reference(q, k, v, N_HEADS, False)
    ref_c = _reference(q, k, v, N_HEADS, True)
    assert out.shape == (B, T, D) and out.dtype == jnp.float32
    # bf16 MXU operands -> loose tolerance vs the f32 reference
    assert jnp.allclose(out, ref, atol=5e-2, rtol=5e-2)
    assert jnp.allclose(out_c, ref_c, atol=5e-2, rtol=5e-2)

    # f32 MXU-operand path: tighter check of the flash recurrence itself
    out_f32 = jax.jit(partial(mh_attention, n_heads=N_HEADS, is_causal=True,
                              mxu_dtype=jnp.float32))(q, k, v)
    jax.block_until_ready(out_f32)
    assert jnp.allclose(out_f32, ref_c, atol=2e-2, rtol=2e-2)

    # --- multi-tile case: exercises online softmax + causal block skipping --
    B2, T2 = 1, 256
    kq2, kk2, kv2 = jax.random.split(jax.random.PRNGKey(1), 3)
    q2 = jax.random.normal(kq2, (B2, T2, D), dtype=jnp.float32)
    k2 = jax.random.normal(kk2, (B2, T2, D), dtype=jnp.float32)
    v2 = jax.random.normal(kv2, (B2, T2, D), dtype=jnp.float32)

    out2 = jax.jit(partial(mh_attention, n_heads=N_HEADS, is_causal=True))(q2, k2, v2)
    jax.block_until_ready(out2)
    ref2 = _reference(q2, k2, v2, N_HEADS, True)
    assert jnp.allclose(out2, ref2, atol=5e-2, rtol=5e-2)

    print("KERNEL_OK")
</pallas_src>

<mosaic_0001>
module attributes {stable_mosaic.version = 11 : i64} {
  func.func @_mha_flash_kernel(%arg0: i32, %arg1: i32, %arg2: i32, %arg3: memref<1x4x16x128xf32, #tpu.memory_space<vmem>>, %arg4: memref<1x4x16x128xf32, #tpu.memory_space<vmem>>, %arg5: memref<1x4x16x128xf32, #tpu.memory_space<vmem>>, %arg6: memref<1x4x16x128xf32, #tpu.memory_space<vmem>>, %arg7: memref<4x16x1xf32, #tpu.memory_space<vmem>>, %arg8: memref<4x16x1xf32, #tpu.memory_space<vmem>>, %arg9: memref<4x16x128xf32, #tpu.memory_space<vmem>>) attributes {dimension_semantics = [#tpu.dimension_semantics<parallel>, #tpu.dimension_semantics<parallel>, #tpu.dimension_semantics<arbitrary>], iteration_bounds = array<i64: 2, 1, 1>, scalar_prefetch = 0 : i64, scratch_operands = 3 : i64, tpu.core_type = #tpu.core_type<tc>, window_params = [{transform_indices = @transform_0, window_bounds = array<i64: 1, 4, 16, 128>}, {transform_indices = @transform_1, window_bounds = array<i64: 1, 4, 16, 128>}, {transform_indices = @transform_2, window_bounds = array<i64: 1, 4, 16, 128>}, {transform_indices = @transform_3, window_bounds = array<i64: 1, 4, 16, 128>}]} {
    %c0_i32 = arith.constant 0 : i32
    %0 = arith.cmpi eq, %arg2, %c0_i32 : i32
    %1 = arith.extui %0 : i1 to i32
    %c0_i32_0 = arith.constant 0 : i32
    %2 = arith.cmpi ne, %1, %c0_i32_0 : i32
    scf.if %2 {
      %cst_36 = arith.constant 0xFF800000 : f32
      %41 = vector.broadcast %cst_36 : f32 to vector<4x16x1xf32>
      %c0_37 = arith.constant 0 : index
      %c0_38 = arith.constant 0 : index
      %c0_39 = arith.constant 0 : index
      %42 = vector.load %arg7[%c0_37, %c0_38, %c0_39] : memref<4x16x1xf32, #tpu.memory_space<vmem>>, vector<4x16x1xf32>
      tpu.vector_store %arg7[%c0_37, %c0_38, %c0_39], %41 {strides = array<i32>} : memref<4x16x1xf32, #tpu.memory_space<vmem>>, vector<4x16x1xf32>,
      %cst_40 = arith.constant 0.000000e+00 : f32
      %43 = vector.broadcast %cst_40 : f32 to vector<4x16x1xf32>
      %c0_41 = arith.constant 0 : index
      %c0_42 = arith.constant 0 : index
      %c0_43 = arith.constant 0 : index
      %44 = vector.load %arg8[%c0_41, %c0_42, %c0_43] : memref<4x16x1xf32, #tpu.memory_space<vmem>>, vector<4x16x1xf32>
      tpu.vector_store %arg8[%c0_41, %c0_42, %c0_43], %43 {strides = array<i32>} : memref<4x16x1xf32, #tpu.memory_space<vmem>>, vector<4x16x1xf32>,
      %cst_44 = arith.constant 0.000000e+00 : f32
      %45 = vector.broadcast %cst_44 : f32 to vector<4x16x128xf32>
      %c0_45 = arith.constant 0 : index
      %c0_46 = arith.constant 0 : index
      %c0_47 = arith.constant 0 : index
      %46 = vector.load %arg9[%c0_45, %c0_46, %c0_47] : memref<4x16x128xf32, #tpu.memory_space<vmem>>, vector<4x16x128xf32>
      tpu.vector_store %arg9[%c0_45, %c0_46, %c0_47], %45 {strides = array<i32>} : memref<4x16x128xf32, #tpu.memory_space<vmem>>, vector<4x16x128xf32>,
    } else {
    }
    %c0 = arith.constant 0 : index
    %c0_1 = arith.constant 0 : index
    %c0_2 = arith.constant 0 : index
    %c0_3 = arith.constant 0 : index
    %3 = vector.load %arg3[%c0, %c0_1, %c0_2, %c0_3] : memref<1x4x16x128xf32, #tpu.memory_space<vmem>>, vector<1x4x16x128xf32>
    %4 = vector.shape_cast %3 : vector<1x4x16x128xf32> to vector<4x16x128xf32>
    %cst = arith.constant 0.0883883461 : f32
    %5 = vector.broadcast %cst : f32 to vector<4x16x128xf32>
    %6 = arith.mulf %4, %5 : vector<4x16x128xf32>
    %7 = arith.truncf %6 : vector<4x16x128xf32> to vector<4x16x128xbf16>
    %c0_4 = arith.constant 0 : index
    %c0_5 = arith.constant 0 : index
    %c0_6 = arith.constant 0 : index
    %c0_7 = arith.constant 0 : index
    %8 = vector.load %arg4[%c0_4, %c0_5, %c0_6, %c0_7] : memref<1x4x16x128xf32, #tpu.memory_space<vmem>>, vector<1x4x16x128xf32>
    %9 = vector.shape_cast %8 : vector<1x4x16x128xf32> to vector<4x16x128xf32>
    %10 = arith.truncf %9 : vector<4x16x128xf32> to vector<4x16x128xbf16>
    %c0_8 = arith.constant 0 : index
    %c0_9 = arith.constant 0 : index
    %c0_10 = arith.constant 0 : index
    %c0_11 = arith.constant 0 : index
    %11 = vector.load %arg5[%c0_8, %c0_9, %c0_10, %c0_11] : memref<1x4x16x128xf32, #tpu.memory_space<vmem>>, vector<1x4x16x128xf32>
    %12 = vector.shape_cast %11 : vector<1x4x16x128xf32> to vector<4x16x128xf32>
    %13 = arith.truncf %12 : vector<4x16x128xf32> to vector<4x16x128xbf16>
    %cst_12 = arith.constant dense<0.000000e+00> : vector<4x16x16xf32>
    %14 = tpu.matmul %7, %10, %cst_12 {dimension_numbers = #tpu.dot_dimension_numbers<[2], [2], [1], [1], [0, 0, 0, 1, 1, 1], [0], [0]>} : vector<4x16x128xbf16>, vector<4x16x128xbf16>, vector<4x16x16xf32> -> vector<4x16x16xf32>
    %c0_13 = arith.constant 0 : index
    %c0_14 = arith.constant 0 : index
    %c0_15 = arith.constant 0 : index
    %15 = vector.load %arg7[%c0_13, %c0_14, %c0_15] : memref<4x16x1xf32, #tpu.memory_space<vmem>>, vector<4x16x1xf32>
    %cst_16 = arith.constant dense<0xFF800000> : vector<4x16xf32>
    %16 = vector.multi_reduction <maximumf>, %14, %cst_16 [2] : vector<4x16x16xf32> to vector<4x16xf32>
    %17 = vector.shape_cast %16 : vector<4x16xf32> to vector<4x16x1xf32>
    %18 = arith.maximumf %15, %17 : vector<4x16x1xf32>
    %19 = arith.subf %15, %18 : vector<4x16x1xf32>
    %20 = math.exp %19 : vector<4x16x1xf32>
    %21 = vector.broadcast %18 : vector<4x16x1xf32> to vector<4x16x16xf32>
    %22 = arith.subf %14, %21 : vector<4x16x16xf32>
    %23 = math.exp %22 : vector<4x16x16xf32>
    %c0_17 = arith.constant 0 : index
    %c0_18 = arith.constant 0 : index
    %c0_19 = arith.constant 0 : index
    %24 = vector.load %arg8[%c0_17, %c0_18, %c0_19] : memref<4x16x1xf32, #tpu.memory_space<vmem>>, vector<4x16x1xf32>
    %25 = arith.mulf %20, %24 : vector<4x16x1xf32>
    %cst_20 = arith.constant dense<0.000000e+00> : vector<4x16xf32>
    %26 = vector.multi_reduction <add>, %23, %cst_20 [2] : vector<4x16x16xf32> to vector<4x16xf32>
    %27 = vector.shape_cast %26 : vector<4x16xf32> to vector<4x16x1xf32>
    %28 = arith.addf %25, %27 : vector<4x16x1xf32>
    %c0_21 = arith.constant 0 : index
    %c0_22 = arith.constant 0 : index
    %c0_23 = arith.constant 0 : index
    %29 = vector.load %arg8[%c0_21, %c0_22, %c0_23] : memref<4x16x1xf32, #tpu.memory_space<vmem>>, vector<4x16x1xf32>
    tpu.vector_store %arg8[%c0_21, %c0_22, %c0_23], %28 {strides = array<i32>} : memref<4x16x1xf32, #tpu.memory_space<vmem>>, vector<4x16x1xf32>,
    %30 = arith.truncf %23 : vector<4x16x16xf32> to vector<4x16x16xbf16>
    %cst_24 = arith.constant dense<0.000000e+00> : vector<4x16x128xf32>
    %31 = tpu.matmul %30, %13, %cst_24 {dimension_numbers = #tpu.dot_dimension_numbers<[2], [1], [1], [2], [0, 0, 0, 1, 1, 2], [0], [0]>} : vector<4x16x16xbf16>, vector<4x16x128xbf16>, vector<4x16x128xf32> -> vector<4x16x128xf32>
    %c0_25 = arith.constant 0 : index
    %c0_26 = arith.constant 0 : index
    %c0_27 = arith.constant 0 : index
    %32 = vector.load %arg9[%c0_25, %c0_26, %c0_27] : memref<4x16x128xf32, #tpu.memory_space<vmem>>, vector<4x16x128xf32>
    %33 = vector.broadcast %20 : vector<4x16x1xf32> to vector<4x16x128xf32>
    %34 = arith.mulf %33, %32 : vector<4x16x128xf32>
    %35 = arith.addf %34, %31 : vector<4x16x128xf32>
    %c0_28 = arith.constant 0 : index
    %c0_29 = arith.constant 0 : index
    %c0_30 = arith.constant 0 : index
    %36 = vector.load %arg9[%c0_28, %c0_29, %c0_30] : memref<4x16x128xf32, #tpu.memory_space<vmem>>, vector<4x16x128xf32>
    tpu.vector_store %arg9[%c0_28, %c0_29, %c0_30], %35 {strides = array<i32>} : memref<4x16x128xf32, #tpu.memory_space<vmem>>, vector<4x16x128xf32>,
    %c0_31 = arith.constant 0 : index
    %c0_32 = arith.constant 0 : index
    %c0_33 = arith.constant 0 : index
    %37 = vector.load %arg7[%c0_31, %c0_32, %c0_33] : memref<4x16x1xf32, #tpu.memory_space<vmem>>, vector<4x16x1xf32>
    tpu.vector_store %arg7[%c0_31, %c0_32, %c0_33], %18 {strides = array<i32>} : memref<4x16x1xf32, #tpu.memory_space<vmem>>, vector<4x16x1xf32>,
    %c0_i32_34 = arith.constant 0 : i32
    %38 = arith.cmpi eq, %arg2, %c0_i32_34 : i32
    %39 = arith.extui %38 : i1 to i32
    %c0_i32_35 = arith.constant 0 : i32
    %40 = arith.cmpi ne, %39, %c0_i32_35 : i32
    scf.if %40 {
      %c0_36 = arith.constant 0 : index
      %c0_37 = arith.constant 0 : index
      %c0_38 = arith.constant 0 : index
      %41 = vector.load %arg8[%c0_36, %c0_37, %c0_38] : memref<4x16x1xf32, #tpu.memory_space<vmem>>, vector<4x16x1xf32>
      %cst_39 = arith.constant 0.000000e+00 : f32
      %42 = vector.broadcast %cst_39 : f32 to vector<4x16x1xf32>
      %43 = arith.cmpf oeq, %41, %42 : vector<4x16x1xf32>
      %cst_40 = arith.constant 1.000000e+00 : f32
      %44 = vector.broadcast %cst_40 : f32 to vector<4x16x1xf32>
      %45 = arith.select %43, %44, %41 : vector<4x16x1xi1>, vector<4x16x1xf32>
      %c0_41 = arith.constant 0 : index
      %c0_42 = arith.constant 0 : index
      %c0_43 = arith.constant 0 : index
      %46 = vector.load %arg9[%c0_41, %c0_42, %c0_43] : memref<4x16x128xf32, #tpu.memory_space<vmem>>, vector<4x16x128xf32>
      %47 = tpu.reciprocal %45 : vector<4x16x1xf32> -> vector<4x16x1xf32>
      %48 = vector.broadcast %47 : vector<4x16x1xf32> to vector<4x16x128xf32>
      %49 = arith.mulf %46, %48 : vector<4x16x128xf32>
      %c0_44 = arith.constant 0 : index
      %c0_45 = arith.constant 0 : index
      %c0_46 = arith.constant 0 : index
      %c0_47 = arith.constant 0 : index
      %50 = vector.load %arg6[%c0_44, %c0_45, %c0_46, %c0_47] : memref<1x4x16x128xf32, #tpu.memory_space<vmem>>, vector<1x4x16x128xf32>
      %51 = vector.shape_cast %50 : vector<1x4x16x128xf32> to vector<4x16x128xf32>
      %52 = vector.shape_cast %49 : vector<4x16x128xf32> to vector<1x4x16x128xf32>
      tpu.vector_store %arg6[%c0_44, %c0_45, %c0_46, %c0_47], %52 {strides = array<i32>} : memref<1x4x16x128xf32, #tpu.memory_space<vmem>>, vector<1x4x16x128xf32>,
    } else {
    }
    return
  }
  func.func @transform_0(%arg0: i32, %arg1: i32, %arg2: i32) -> (i32, i32, i32, i32) {
    %c0_i32 = arith.constant 0 : i32
    %c0_i32_0 = arith.constant 0 : i32
    %c0_i32_1 = arith.constant 0 : i32
    return %arg0, %c0_i32, %arg1, %c0_i32_0 : i32, i32, i32, i32
  }
  func.func @transform_1(%arg0: i32, %arg1: i32, %arg2: i32) -> (i32, i32, i32, i32) {
    %c0_i32 = arith.constant 0 : i32
    %c0_i32_0 = arith.constant 0 : i32
    %c0_i32_1 = arith.constant 0 : i32
    return %arg0, %c0_i32, %arg2, %c0_i32_0 : i32, i32, i32, i32
  }
  func.func @transform_2(%arg0: i32, %arg1: i32, %arg2: i32) -> (i32, i32, i32, i32) {
    %c0_i32 = arith.constant 0 : i32
    %c0_i32_0 = arith.constant 0 : i32
    %c0_i32_1 = arith.constant 0 : i32
    return %arg0, %c0_i32, %arg2, %c0_i32_0 : i32, i32, i32, i32
  }
  func.func @transform_3(%arg0: i32, %arg1: i32, %arg2: i32) -> (i32, i32, i32, i32) {
    %c0_i32 = arith.constant 0 : i32
    %c0_i32_0 = arith.constant 0 : i32
    %c0_i32_1 = arith.constant 0 : i32
    return %arg0, %c0_i32, %arg1, %c0_i32_0 : i32, i32, i32, i32
  }
}

</mosaic_0001>

<llo_original>
// kernel: mh_attention.1
$region0: #{mh_attention.1}
  #allocation0 [shape = 'u32[]', space=smem, size = 0x4, offset = 0x4, fixed_abs, tag = 'smem constant byte address 0x4 - core index']
  #allocation1 [shape = 'u32[144,128]{1,0:T(1,128)}', space=vmem, size = 0x12000, scoped, tag = 'internal scratch']
  #allocation2 [shape = 'f32[4,16,1]{2,1,0:T(8,128)}', space=vmem, size = 0x8000, scoped, tag = 'scratch operand']
  #allocation3 [shape = 'f32[4,16,1]{2,1,0:T(8,128)}', space=vmem, size = 0x8000, scoped, tag = 'scratch operand']
  #allocation4 [shape = 'f32[4,16,128]{2,1,0:T(8,128)}', space=vmem, size = 0x8000, scoped, tag = 'scratch operand']
  %s0 = inlined_call_operand.vmem [shape: f32[2,4,16,128], index: 0, kind: input, shape index: {}]
  %s1 = inlined_call_operand.vmem [shape: f32[2,4,16,128], index: 1, kind: input, shape index: {}]
  %s2 = inlined_call_operand.vmem [shape: f32[2,4,16,128], index: 2, kind: input, shape index: {}]
  %s3 = inlined_call_operand.vmem [shape: f32[2,4,16,128], index: 3, kind: output, shape index: {}]
  %s4 = sld [smem:[#allocation0]]
  $region53: #{mh_attention.1} parent=0
    _
  %s6 = ssub.s32 1, %s4
  %s7 = scalar_select 0, %s6, %s4
  loop: start=0, step=1, limit=4
  $region2: #{mh_attention.1} parent=0 // loop_pre_header
    _
  $region3: #{mh_attention.1} parent=0 // loop_header
    %s9 = sphi 0, %s13
    %p10 = scmp.ge.s32.totalorder %s9, 4
    %s16 = sphi 0, %s35
    %s17 = sphi 0, %s31
    %s18 = sphi 0, %s27
    %s19 = sphi 0, %s16
    %s20 = sphi 0, %s17
    %s21 = sphi 0, %s18
    %s22 = sphi 0, %s19
    %s23 = sphi 0, %s20
    %s24 = sphi 0, %s21
    %s40 = sphi 0, %s42
    %s43 = sphi 0, %s40
    %s44 = sphi 0, %s43
    %s60 = sphi 0, %s44
    %s68 = sphi 0, %s70
    %s71 = sphi 0, %s68
    %s72 = sphi 0, %s71
    %s88 = sphi 0, %s72
    %s96 = sphi 0, %s98
    %s99 = sphi 0, %s96
    %s100 = sphi 0, %s99
    %s116 = sphi 0, %s100
    %s124 = sphi 0, %s126
    %s127 = sphi 0, %s124
    %s128 = sphi 0, %s127
    %s144 = sphi 0, %s128
  $region4: #{mh_attention.1} parent=0 // loop_header_branch
    %12 = sbr.rel (%p10) target = $region8
  $region5: #{mh_attention.1} parent=0 // loop_body
    %s14 = ssub.s32 %s9, 1
    %s15 = ssub.s32 %s9, 2
    %s25 = sadd.s32 1, %s18
    %p26 = scmp.ge.s32.totalorder %s25, 1
    %s27 = scalar_select %p26, 0, %s25
    %s28 = sadd.s32 1, %s17
    %s29 = scalar_select %p26, %s28, %s17
    %p30 = scmp.ge.s32.totalorder %s29, 1
    %s31 = scalar_select %p30, 0, %s29
    %s32 = sadd.s32 1, %s16
    %s33 = scalar_select %p30, %s32, %s16
    %p34 = scmp.ge.s32.totalorder %s33, 2
    %s35 = scalar_select %p34, 0, %s33
    %s36 = ssub.s32 %s16, %s35
    %s37 = ssub.s32 %s17, %s31
    %s38 = sor.u32 %s36, %s37
    %p39 = scmp.eq.s32.totalorder %s38, 0
    %s41 = sadd.s32 %s40, 1
    %s42 = scalar_select %p39, %s40, %s41
    %p45 = pneg %p39
    %p46 = scmp.eq.s32.totalorder %s9, 1
    %p47 = por %p45, %p46
    %p48 = scmp.ne.s32.totalorder %s40, %s43
    %p49 = scmp.eq.s32.totalorder %s9, 0
    %p50 = por %p48, %p49
    %p51 = scmp.ne.s32.totalorder %s40, %s43
    %p52 = scmp.eq.s32.totalorder %s14, 1
    %p53 = por %p51, %p52
    %p54 = scmp.ne.s32.totalorder %s43, %s44
    %p55 = scmp.eq.s32.totalorder %s14, 0
    %p56 = por %p54, %p55
    %p57 = scmp.ne.s32.totalorder %s43, %s44
    %p58 = scmp.eq.s32.totalorder %s15, 1
    %p59 = por %p57, %p58
    %p61 = scmp.ne.s32.totalorder %s44, %s60
    %p62 = scmp.eq.s32.totalorder %s15, 0
    %p63 = por %p61, %p62
    %s64 = ssub.s32 %s16, %s35
    %s65 = ssub.s32 %s18, %s27
    %s66 = sor.u32 %s64, %s65
    %p67 = scmp.eq.s32.totalorder %s66, 0
    %s69 = sadd.s32 %s68, 1
    %s70 = scalar_select %p67, %s68, %s69
    %p73 = pneg %p67
    %p74 = scmp.eq.s32.totalorder %s9, 1
    %p75 = por %p73, %p74
    %p76 = scmp.ne.s32.totalorder %s68, %s71
    %p77 = scmp.eq.s32.totalorder %s9, 0
    %p78 = por %p76, %p77
    %p79 = scmp.ne.s32.totalorder %s68, %s71
    %p80 = scmp.eq.s32.totalorder %s14, 1
    %p81 = por %p79, %p80
    %p82 = scmp.ne.s32.totalorder %s71, %s72
    %p83 = scmp.eq.s32.totalorder %s14, 0
    %p84 = por %p82, %p83
    %p85 = scmp.ne.s32.totalorder %s71, %s72
    %p86 = scmp.eq.s32.totalorder %s15, 1
    %p87 = por %p85, %p86
    %p89 = scmp.ne.s32.totalorder %s72, %s88
    %p90 = scmp.eq.s32.totalorder %s15, 0
    %p91 = por %p89, %p90
    %s92 = ssub.s32 %s16, %s35
    %s93 = ssub.s32 %s18, %s27
    %s94 = sor.u32 %s92, %s93
    %p95 = scmp.eq.s32.totalorder %s94, 0
    %s97 = sadd.s32 %s96, 1
    %s98 = scalar_select %p95, %s96, %s97
    %p101 = pneg %p95
    %p102 = scmp.eq.s32.totalorder %s9, 1
    %p103 = por %p101, %p102
    %p104 = scmp.ne.s32.totalorder %s96, %s99
    %p105 = scmp.eq.s32.totalorder %s9, 0
    %p106 = por %p104, %p105
    %p107 = scmp.ne.s32.totalorder %s96, %s99
    %p108 = scmp.eq.s32.totalorder %s14, 1
    %p109 = por %p107, %p108
    %p110 = scmp.ne.s32.totalorder %s99, %s100
    %p111 = scmp.eq.s32.totalorder %s14, 0
    %p112 = por %p110, %p111
    %p113 = scmp.ne.s32.totalorder %s99, %s100
    %p114 = scmp.eq.s32.totalorder %s15, 1
    %p115 = por %p113, %p114
    %p117 = scmp.ne.s32.totalorder %s100, %s116
    %p118 = scmp.eq.s32.totalorder %s15, 0
    %p119 = por %p117, %p118
    %s120 = ssub.s32 %s16, %s35
    %s121 = ssub.s32 %s17, %s31
    %s122 = sor.u32 %s120, %s121
    %p123 = scmp.eq.s32.totalorder %s122, 0
    %s125 = sadd.s32 %s124, 1
    %s126 = scalar_select %p123, %s124, %s125
    %p129 = pneg %p123
    %p130 = scmp.eq.s32.totalorder %s9, 1
    %p131 = por %p129, %p130
    %p132 = scmp.ne.s32.totalorder %s124, %s127
    %p133 = scmp.eq.s32.totalorder %s9, 0
    %p134 = por %p132, %p133
    %p135 = scmp.ne.s32.totalorder %s124, %s127
    %p136 = scmp.eq.s32.totalorder %s14, 1
    %p137 = por %p135, %p136
    %p138 = scmp.ne.s32.totalorder %s127, %s128
    %p139 = scmp.eq.s32.totalorder %s14, 0
    %p140 = por %p138, %p139
    %p141 = scmp.ne.s32.totalorder %s127, %s128
    %p142 = scmp.eq.s32.totalorder %s15, 1
    %p143 = por %p141, %p142
    %p145 = scmp.ne.s32.totalorder %s128, %s144
    %p146 = scmp.eq.s32.totalorder %s15, 0
    %p147 = por %p145, %p146
    %p148 = scmp.le.s32.totalorder 1, %s9
    %p149 = scmp.lt.s32.totalorder %s9, 3
    %p150 = pnand %p148, %p149
    %p151 = pneg %p150
    // Predicated region
    $region9: #{mh_attention.1} parent=5 // pred_check
      _
    $region10: #{mh_attention.1} parent=5 // pred_check_branch
      %153 = sbr.rel (%p150) target = $region12
    $region11: #{mh_attention.1} parent=5 // pred_region
      %s154 = ssub.s32 %s9, 1
    $region12: #{mh_attention.1} parent=5 // pred_fallthru
      _
    %p155 = scmp.lt.s32.totalorder %s9, 2
    // Predicated region
    $region13: #{mh_attention.1} parent=5 // pred_check
      %p156 = pneg %p155
    $region14: #{mh_attention.1} parent=5 // pred_check_branch
      %158 = sbr.rel (%p156) target = $region16
    $region15: #{mh_attention.1} parent=5 // pred_region
      // Predicated region
      $region17: #{mh_attention.1} parent=15 // pred_check
        %p159 = pneg %p50
      $region18: #{mh_attention.1} parent=15 // pred_check_branch
        %161 = sbr.rel (%p159) target = $region20
      $region19: #{mh_attention.1} parent=15 // pred_region
        %s162 = smul.u32 2, %s17
        %p163 = scmp.lt.s32.totalorder %s16, 1
        %s164 = scalar_select %p163, %s16, 1
        %p165 = scmp.lt.s32.totalorder %s162, 1
        %s166 = scalar_select %p165, %s162, 1
        %s167 = smul.addr %s164, 8
        %s168 = sadd.s32 %s166, %s167
        %s169 = smul.addr %s168, 8
        %s170 = scalar_lea.vmem %s0, %s169
        %s171 = smul.u32 2, %s17
      $region20: #{mh_attention.1} parent=15 // pred_fallthru
        _
      // Predicated region
      $region21: #{mh_attention.1} parent=15 // pred_check
        %p172 = pneg %p78
      $region22: #{mh_attention.1} parent=15 // pred_check_branch
        %174 = sbr.rel (%p172) target = $region24
      $region23: #{mh_attention.1} parent=15 // pred_region
        %s175 = smul.u32 2, %s18
        %p176 = scmp.lt.s32.totalorder %s16, 1
        %s177 = scalar_select %p176, %s16, 1
        %p178 = scmp.lt.s32.totalorder %s175, 1
        %s179 = scalar_select %p178, %s175, 1
        %s180 = smul.addr %s177, 8
        %s181 = sadd.s32 %s179, %s180
        %s182 = smul.addr %s181, 8
        %s183 = scalar_lea.vmem %s1, %s182
        %s184 = smul.u32 2, %s18
      $region24: #{mh_attention.1} parent=15 // pred_fallthru
        _
      // Predicated region
      $region25: #{mh_attention.1} parent=15 // pred_check
        %p185 = pneg %p106
      $region26: #{mh_attention.1} parent=15 // pred_check_branch
        %187 = sbr.rel (%p185) target = $region28
      $region27: #{mh_attention.1} parent=15 // pred_region
        %s188 = smul.u32 2, %s18
        %p189 = scmp.lt.s32.totalorder %s16, 1
        %s190 = scalar_select %p189, %s16, 1
        %p191 = scmp.lt.s32.totalorder %s188, 1
        %s192 = scalar_select %p191, %s188, 1
        %s193 = smul.addr %s190, 8
        %s194 = sadd.s32 %s192, %s193
        %s195 = smul.addr %s194, 8
        %s196 = scalar_lea.vmem %s2, %s195
        %s197 = smul.u32 2, %s18
      $region28: #{mh_attention.1} parent=15 // pred_fallthru
        _
    $region16: #{mh_attention.1} parent=5 // pred_fallthru
      _
    %p198 = scmp.le.s32.totalorder 1, %s9
    %p199 = scmp.lt.s32.totalorder %s9, 3
    %p200 = pnand %p198, %p199
    %p201 = pneg %p200
    // Predicated region
    $region29: #{mh_attention.1} parent=5 // pred_check
      _
    $region30: #{mh_attention.1} parent=5 // pred_check_branch
      %203 = sbr.rel (%p200) target = $region32
    $region31: #{mh_attention.1} parent=5 // pred_region
      %s204 = ssub.s32 %s9, 1
      %s205 = smul.u32 2, %s20
      %p206 = scmp.lt.s32.totalorder %s19, 1
      %s207 = scalar_select %p206, %s19, 1
      %p208 = scmp.lt.s32.totalorder %s205, 1
      %s209 = scalar_select %p208, %s205, 1
      %s210 = smul.addr %s207, 8
      %s211 = sadd.s32 %s209, %s210
      %s212 = smul.addr %s211, 8
      %s213 = scalar_lea.vmem %s0, %s212
      %p214 = pneg %p56
      %p215 = pneg %p53
      %s216 = smul.u32 2, %s21
      %p217 = scmp.lt.s32.totalorder %s19, 1
      %s218 = scalar_select %p217, %s19, 1
      %p219 = scmp.lt.s32.totalorder %s216, 1
      %s220 = scalar_select %p219, %s216, 1
      %s221 = smul.addr %s218, 8
      %s222 = sadd.s32 %s220, %s221
      %s223 = smul.addr %s222, 8
      %s224 = scalar_lea.vmem %s1, %s223
      %p225 = pneg %p84
      %p226 = pneg %p81
      %s227 = smul.u32 2, %s21
      %p228 = scmp.lt.s32.totalorder %s19, 1
      %s229 = scalar_select %p228, %s19, 1
      %p230 = scmp.lt.s32.totalorder %s227, 1
      %s231 = scalar_select %p230, %s227, 1
      %s232 = smul.addr %s229, 8
      %s233 = sadd.s32 %s231, %s232
      %s234 = smul.addr %s233, 8
      %s235 = scalar_lea.vmem %s2, %s234
      %p236 = pneg %p112
      %p237 = pneg %p109
      %p238 = pneg %p140
      %p239 = pneg %p137
      %s240 = smul.u32 2, %s20
      %p241 = scmp.lt.s32.totalorder %s19, 1
      %s242 = scalar_select %p241, %s19, 1
      %p243 = scmp.lt.s32.totalorder %s240, 1
      %s244 = scalar_select %p243, %s240, 1
      %s245 = smul.addr %s242, 8
      %s246 = sadd.s32 %s244, %s245
      %s247 = smul.addr %s246, 8
      %s248 = scalar_lea.vmem %s3, %s247
      %s249 = smul.u32 2, %s20
      %p250 = scmp.lt.s32.totalorder %s19, 1
      %s251 = scalar_select %p250, %s19, 1
      %p252 = scmp.lt.s32.totalorder %s249, 1
      %s253 = scalar_select %p252, %s249, 1
      %s254 = smul.addr %s251, 8
      %s255 = sadd.s32 %s253, %s254
      %s256 = smul.addr %s255, 8
      %s257 = scalar_lea.vmem %s0, %s256
      %s258 = smul.u32 2, %s20
      %s259 = smul.u32 2, %s21
      %p260 = scmp.lt.s32.totalorder %s19, 1
      %s261 = scalar_select %p260, %s19, 1
      %p262 = scmp.lt.s32.totalorder %s259, 1
      %s263 = scalar_select %p262, %s259, 1
      %s264 = smul.addr %s261, 8
      %s265 = sadd.s32 %s263, %s264
      %s266 = smul.addr %s265, 8
      %s267 = scalar_lea.vmem %s1, %s266
      %s268 = smul.u32 2, %s21
      %s269 = smul.u32 2, %s21
      %p270 = scmp.lt.s32.totalorder %s19, 1
      %s271 = scalar_select %p270, %s19, 1
      %p272 = scmp.lt.s32.totalorder %s269, 1
      %s273 = scalar_select %p272, %s269, 1
      %s274 = smul.addr %s271, 8
      %s275 = sadd.s32 %s273, %s274
      %s276 = smul.addr %s275, 8
      %s277 = scalar_lea.vmem %s2, %s276
      %s278 = smul.u32 2, %s21
      %s279 = smul.u32 2, %s20
      %p280 = scmp.lt.s32.totalorder %s19, 1
      %s281 = scalar_select %p280, %s19, 1
      %p282 = scmp.lt.s32.totalorder %s279, 1
      %s283 = scalar_select %p282, %s279, 1
      %s284 = smul.addr %s281, 8
      %s285 = sadd.s32 %s283, %s284
      %s286 = smul.addr %s285, 8
      %s287 = scalar_lea.vmem %s3, %s286
      %s288 = smul.u32 2, %s20
      %p290 = scmp.eq.s32.totalorder %s21, 0
      // Predicated region
      $region33: #{mh_attention.1} parent=31 // pred_check
        %p291 = pneg %p290
      $region34: #{mh_attention.1} parent=31 // pred_check_branch
        %293 = sbr.rel (%p291) target = $region36
      $region35: #{mh_attention.1} parent=31 // pred_region
        %vm294 = vcmask 7168
        %295 = vst.msk [vmem:[#allocation2] sm:$0xff] %vm294, -inf
        %296 = vst.msk [vmem:[#allocation2 + $0x8] sm:$0xff] %vm294, -inf
        %297 = vst.msk [vmem:[#allocation2 + $0x10] sm:$0xff] %vm294, -inf
        %298 = vst.msk [vmem:[#allocation2 + $0x18] sm:$0xff] %vm294, -inf
        %299 = vst.msk [vmem:[#allocation2 + $0x20] sm:$0xff] %vm294, -inf
        %300 = vst.msk [vmem:[#allocation2 + $0x28] sm:$0xff] %vm294, -inf
        %301 = vst.msk [vmem:[#allocation2 + $0x30] sm:$0xff] %vm294, -inf
        %302 = vst.msk [vmem:[#allocation2 + $0x38] sm:$0xff] %vm294, -inf
        %303 = vst.msk [vmem:[#allocation3] sm:$0xff] %vm294, 0.0
        %304 = vst.msk [vmem:[#allocation3 + $0x8] sm:$0xff] %vm294, 0.0
        %305 = vst.msk [vmem:[#allocation3 + $0x10] sm:$0xff] %vm294, 0.0
        %306 = vst.msk [vmem:[#allocation3 + $0x18] sm:$0xff] %vm294, 0.0
        %307 = vst.msk [vmem:[#allocation3 + $0x20] sm:$0xff] %vm294, 0.0
        %308 = vst.msk [vmem:[#allocation3 + $0x28] sm:$0xff] %vm294, 0.0
        %309 = vst.msk [vmem:[#allocation3 + $0x30] sm:$0xff] %vm294, 0.0
        %310 = vst.msk [vmem:[#allocation3 + $0x38] sm:$0xff] %vm294, 0.0
        %311 = vst [vmem:[#allocation4] sm:$0xff] 0.0
        %312 = vst [vmem:[#allocation4 + $0x8] sm:$0xff] 0.0
        %313 = vst [vmem:[#allocation4 + $0x10] sm:$0xff] 0.0
        %314 = vst [vmem:[#allocation4 + $0x18] sm:$0xff] 0.0
        %315 = vst [vmem:[#allocation4 + $0x20] sm:$0xff] 0.0
        %316 = vst [vmem:[#allocation4 + $0x28] sm:$0xff] 0.0
        %317 = vst [vmem:[#allocation4 + $0x30] sm:$0xff] 0.0
        %318 = vst [vmem:[#allocation4 + $0x38] sm:$0xff] 0.0
      $region36: #{mh_attention.1} parent=31 // pred_fallthru
        _
      %v319 = vld [vmem:[%s257] sm:$0xff]
      %v320 = vld [vmem:[%s257 + $0x8] sm:$0xff]
      %v321 = vld [vmem:[%s257 + $0x10] sm:$0xff]
      %v322 = vld [vmem:[%s257 + $0x18] sm:$0xff]
      %v323 = vld [vmem:[%s257 + $0x20] sm:$0xff]
      %v324 = vld [vmem:[%s257 + $0x28] sm:$0xff]
      %v325 = vld [vmem:[%s257 + $0x30] sm:$0xff]
      %v326 = vld [vmem:[%s257 + $0x38] sm:$0xff]
      %v327 = vmul.f32 %v319, 0.088388346
      %v328 = vmul.f32 %v320, 0.088388346
      %v329 = vmul.f32 %v321, 0.088388346
      %v330 = vmul.f32 %v322, 0.088388346
      %v331 = vmul.f32 %v323, 0.088388346
      %v332 = vmul.f32 %v324, 0.088388346
      %v333 = vmul.f32 %v325, 0.088388346
      %v334 = vmul.f32 %v326, 0.088388346
      %v335 = vpack.c.bf16 %v328, %v327
      %v336 = vpack.c.bf16 %v330, %v329
      %v337 = vpack.c.bf16 %v332, %v331
      %v338 = vpack.c.bf16 %v334, %v333
      %v339 = vld [vmem:[%s267] sm:$0xff]
      %v340 = vld [vmem:[%s267 + $0x8] sm:$0xff]
      %v341 = vld [vmem:[%s267 + $0x10] sm:$0xff]
      %v342 = vld [vmem:[%s267 + $0x18] sm:$0xff]
      %v343 = vld [vmem:[%s267 + $0x20] sm:$0xff]
      %v344 = vld [vmem:[%s267 + $0x28] sm:$0xff]
      %v345 = vld [vmem:[%s267 + $0x30] sm:$0xff]
      %v346 = vld [vmem:[%s267 + $0x38] sm:$0xff]
      %v347 = vpack.c.bf16 %v340, %v339
      %v348 = vpack.c.bf16 %v342, %v341
      %v349 = vpack.c.bf16 %v344, %v343
      %v350 = vpack.c.bf16 %v346, %v345
      %v351 = vld [vmem:[%s277] sm:$0xff]
      %v352 = vld [vmem:[%s277 + $0x8] sm:$0xff]
      %v353 = vld [vmem:[%s277 + $0x10] sm:$0xff]
      %v354 = vld [vmem:[%s277 + $0x18] sm:$0xff]
      %v355 = vld [vmem:[%s277 + $0x20] sm:$0xff]
      %v356 = vld [vmem:[%s277 + $0x28] sm:$0xff]
      %v357 = vld [vmem:[%s277 + $0x30] sm:$0xff]
      %v358 = vld [vmem:[%s277 + $0x38] sm:$0xff]
      %v359 = vpack.c.bf16 %v352, %v351
      %v360 = vpack.c.bf16 %v354, %v353
      %v361 = vpack.c.bf16 %v356, %v355
      %v362 = vpack.c.bf16 %v358, %v357
      %363 = vmatprep.subr.bf16.mxu0 0
      %364 = vmatpush1.bf16.xpose.msra.mxu0 %v347
      %365 = vmatprep.subr.bf16.mxu0 0
      %366 = vmatpush1.bf16.xpose.msra.mxu0 0
      %367 = vmatprep.subr.bf16.mxu0 0
      %368 = vmatpush1.bf16.xpose.msra.mxu0 0
      %369 = vmatprep.subr.bf16.mxu0 0
      %370 = vmatpush1.bf16.xpose.msra.mxu0 0
      %371 = vmatprep.subr.bf16.mxu0 0
      %372 = vmatpush1.bf16.xpose.msra.mxu0 0
      %373 = vmatprep.subr.bf16.mxu0 0
      %374 = vmatpush1.bf16.xpose.msra.mxu0 0
      %375 = vmatprep.subr.bf16.mxu0 0
      %376 = vmatpush1.bf16.xpose.msra.mxu0 0
      %377 = vmatprep.subr.bf16.mxu0 0
      %378 = vmatpush1.bf16.xpose.msra.mxu0 0
      %379 = vmatprep.subr.bf16.mxu0 0
      %380 = vmatpush1.bf16.xpose.msra.mxu0 0
      %381 = vmatprep.subr.bf16.mxu0 0
      %382 = vmatpush1.bf16.xpose.msra.mxu0 0
      %383 = vmatprep.subr.bf16.mxu0 0
      %384 = vmatpush1.bf16.xpose.msra.mxu0 0
      %385 = vmatprep.subr.bf16.mxu0 0
      %386 = vmatpush1.bf16.xpose.msra.mxu0 0
      %387 = vmatprep.subr.bf16.mxu0 0
      %388 = vmatpush1.bf16.xpose.msra.mxu0 0
      %389 = vmatprep.subr.bf16.mxu0 0
      %390 = vmatpush1.bf16.xpose.msra.mxu0 0
      %391 = vmatprep.subr.bf16.mxu0 0
      %392 = vmatpush1.bf16.xpose.msra.mxu0 0
      %393 = vmatprep.subr.bf16.mxu0 0
      %394 = vmatpush1.bf16.xpose.msra.mxu0 0
      %395 = vmatprep.mubr.bf16.mxu0 0
      %396 = vmatmul.mubr.bf16.gmra.mrb[0].mxu0 %v335
      %v397 = vpop.f32.mrb[0].mxu0
      %v398 = vadd.f32 0.0, %v397
      %v399 = vpop.f32.mrb[0].mxu0
      %v400 = vpop.f32.mrb[0].mxu0
      %v401 = vadd.f32 0.0, %v400
      %v402 = vpop.f32.mrb[0].mxu0
      %403 = vdwg.mxu0
      %404 = vmatprep.subr.bf16.mxu0 0
      %405 = vmatpush1.bf16.xpose.msra.mxu0 %v348
      %406 = vmatprep.subr.bf16.mxu0 0
      %407 = vmatpush1.bf16.xpose.msra.mxu0 0
      %408 = vmatprep.subr.bf16.mxu0 0
      %409 = vmatpush1.bf16.xpose.msra.mxu0 0
      %410 = vmatprep.subr.bf16.mxu0 0
      %411 = vmatpush1.bf16.xpose.msra.mxu0 0
      %412 = vmatprep.subr.bf16.mxu0 0
      %413 = vmatpush1.bf16.xpose.msra.mxu0 0
      %414 = vmatprep.subr.bf16.mxu0 0
      %415 = vmatpush1.bf16.xpose.msra.mxu0 0
      %416 = vmatprep.subr.bf16.mxu0 0
      %417 = vmatpush1.bf16.xpose.msra.mxu0 0
      %418 = vmatprep.subr.bf16.mxu0 0
      %419 = vmatpush1.bf16.xpose.msra.mxu0 0
      %420 = vmatprep.subr.bf16.mxu0 0
      %421 = vmatpush1.bf16.xpose.msra.mxu0 0
      %422 = vmatprep.subr.bf16.mxu0 0
      %423 = vmatpush1.bf16.xpose.msra.mxu0 0
      %424 = vmatprep.subr.bf16.mxu0 0
      %425 = vmatpush1.bf16.xpose.msra.mxu0 0
      %426 = vmatprep.subr.bf16.mxu0 0
      %427 = vmatpush1.bf16.xpose.msra.mxu0 0
      %428 = vmatprep.subr.bf16.mxu0 0
      %429 = vmatpush1.bf16.xpose.msra.mxu0 0
      %430 = vmatprep.subr.bf16.mxu0 0
      %431 = vmatpush1.bf16.xpose.msra.mxu0 0
      %432 = vmatprep.subr.bf16.mxu0 0
      %433 = vmatpush1.bf16.xpose.msra.mxu0 0
      %434 = vmatprep.subr.bf16.mxu0 0
      %435 = vmatpush1.bf16.xpose.msra.mxu0 0
      %436 = vmatprep.mubr.bf16.mxu0 0
      %437 = vmatmul.mubr.bf16.gmra.mrb[0].mxu0 %v336
      %v438 = vpop.f32.mrb[0].mxu0
      %v439 = vadd.f32 0.0, %v438
      %v440 = vpop.f32.mrb[0].mxu0
      %v441 = vpop.f32.mrb[0].mxu0
      %v442 = vadd.f32 0.0, %v441
      %v443 = vpop.f32.mrb[0].mxu0
      %444 = vdwg.mxu0
      %445 = vmatprep.subr.bf16.mxu0 0
      %446 = vmatpush1.bf16.xpose.msra.mxu0 %v349
      %447 = vmatprep.subr.bf16.mxu0 0
      %448 = vmatpush1.bf16.xpose.msra.mxu0 0
      %449 = vmatprep.subr.bf16.mxu0 0
      %450 = vmatpush1.bf16.xpose.msra.mxu0 0
      %451 = vmatprep.subr.bf16.mxu0 0
      %452 = vmatpush1.bf16.xpose.msra.mxu0 0
      %453 = vmatprep.subr.bf16.mxu0 0
      %454 = vmatpush1.bf16.xpose.msra.mxu0 0
      %455 = vmatprep.subr.bf16.mxu0 0
      %456 = vmatpush1.bf16.xpose.msra.mxu0 0
      %457 = vmatprep.subr.bf16.mxu0 0
      %458 = vmatpush1.bf16.xpose.msra.mxu0 0
      %459 = vmatprep.subr.bf16.mxu0 0
      %460 = vmatpush1.bf16.xpose.msra.mxu0 0
      %461 = vmatprep.subr.bf16.mxu0 0
      %462 = vmatpush1.bf16.xpose.msra.mxu0 0
      %463 = vmatprep.subr.bf16.mxu0 0
      %464 = vmatpush1.bf16.xpose.msra.mxu0 0
      %465 = vmatprep.subr.bf16.mxu0 0
      %466 = vmatpush1.bf16.xpose.msra.mxu0 0
      %467 = vmatprep.subr.bf16.mxu0 0
      %468 = vmatpush1.bf16.xpose.msra.mxu0 0
      %469 = vmatprep.subr.bf16.mxu0 0
      %470 = vmatpush1.bf16.xpose.msra.mxu0 0
      %471 = vmatprep.subr.bf16.mxu0 0
      %472 = vmatpush1.bf16.xpose.msra.mxu0 0
      %473 = vmatprep.subr.bf16.mxu0 0
      %474 = vmatpush1.bf16.xpose.msra.mxu0 0
      %475 = vmatprep.subr.bf16.mxu0 0
      %476 = vmatpush1.bf16.xpose.msra.mxu0 0
      %477 = vmatprep.mubr.bf16.mxu0 0
      %478 = vmatmul.mubr.bf16.gmra.mrb[0].mxu0 %v337
      %v479 = vpop.f32.mrb[0].mxu0
      %v480 = vadd.f32 0.0, %v479
      %v481 = vpop.f32.mrb[0].mxu0
      %v482 = vpop.f32.mrb[0].mxu0
      %v483 = vadd.f32 0.0, %v482
      %v484 = vpop.f32.mrb[0].mxu0
      %485 = vdwg.mxu0
      %486 = vmatprep.subr.bf16.mxu0 0
      %487 = vmatpush1.bf16.xpose.msra.mxu0 %v350
      %488 = vmatprep.subr.bf16.mxu0 0
      %489 = vmatpush1.bf16.xpose.msra.mxu0 0
      %490 = vmatprep.subr.bf16.mxu0 0
      %491 = vmatpush1.bf16.xpose.msra.mxu0 0
      %492 = vmatprep.subr.bf16.mxu0 0
      %493 = vmatpush1.bf16.xpose.msra.mxu0 0
      %494 = vmatprep.subr.bf16.mxu0 0
      %495 = vmatpush1.bf16.xpose.msra.mxu0 0
      %496 = vmatprep.subr.bf16.mxu0 0
      %497 = vmatpush1.bf16.xpose.msra.mxu0 0
      %498 = vmatprep.subr.bf16.mxu0 0
      %499 = vmatpush1.bf16.xpose.msra.mxu0 0
      %500 = vmatprep.subr.bf16.mxu0 0
      %501 = vmatpush1.bf16.xpose.msra.mxu0 0
      %502 = vmatprep.subr.bf16.mxu0 0
      %503 = vmatpush1.bf16.xpose.msra.mxu0 0
      %504 = vmatprep.subr.bf16.mxu0 0
      %505 = vmatpush1.bf16.xpose.msra.mxu0 0
      %506 = vmatprep.subr.bf16.mxu0 0
      %507 = vmatpush1.bf16.xpose.msra.mxu0 0
      %508 = vmatprep.subr.bf16.mxu0 0
      %509 = vmatpush1.bf16.xpose.msra.mxu0 0
      %510 = vmatprep.subr.bf16.mxu0 0
      %511 = vmatpush1.bf16.xpose.msra.mxu0 0
      %512 = vmatprep.subr.bf16.mxu0 0
      %513 = vmatpush1.bf16.xpose.msra.mxu0 0
      %514 = vmatprep.subr.bf16.mxu0 0
      %515 = vmatpush1.bf16.xpose.msra.mxu0 0
      %516 = vmatprep.subr.bf16.mxu0 0
      %517 = vmatpush1.bf16.xpose.msra.mxu0 0
      %518 = vmatprep.mubr.bf16.mxu0 0
      %519 = vmatmul.mubr.bf16.gmra.mrb[0].mxu0 %v338
      %v520 = vpop.f32.mrb[0].mxu0
      %v521 = vadd.f32 0.0, %v520
      %v522 = vpop.f32.mrb[0].mxu0
      %v523 = vpop.f32.mrb[0].mxu0
      %v524 = vadd.f32 0.0, %v523
      %v525 = vpop.f32.mrb[0].mxu0
      %526 = vdwg.mxu0
      %v527 = vld [vmem:[#allocation2] sm:$0xff]
      %v528 = vld [vmem:[#allocation2 + $0x8] sm:$0xff]
      %v529 = vld [vmem:[#allocation2 + $0x10] sm:$0xff]
      %v530 = vld [vmem:[#allocation2 + $0x18] sm:$0xff]
      %v531 = vld [vmem:[#allocation2 + $0x20] sm:$0xff]
      %v532 = vld [vmem:[#allocation2 + $0x28] sm:$0xff]
      %v533 = vld [vmem:[#allocation2 + $0x30] sm:$0xff]
      %v534 = vld [vmem:[#allocation2 + $0x38] sm:$0xff]
      %vm535 = vcmask 130048
      %v536 = vsel %vm535, %v398, -inf
      %537 = vmax.xlane.f32.xlu0 %v536
      %v538 = vpop.xlane.xlu0 %537
      %v539 = vsel %vm535, %v401, -inf
      %540 = vmax.xlane.f32.xlu0 %v539
      %v541 = vpop.xlane.xlu0 %540
      %v542 = vsel %vm535, %v439, -inf
      %543 = vmax.xlane.f32.xlu0 %v542
      %v544 = vpop.xlane.xlu0 %543
      %v545 = vsel %vm535, %v442, -inf
      %546 = vmax.xlane.f32.xlu0 %v545
      %v547 = vpop.xlane.xlu0 %546
      %v548 = vsel %vm535, %v480, -inf
      %549 = vmax.xlane.f32.xlu0 %v548
      %v550 = vpop.xlane.xlu0 %549
      %v551 = vsel %vm535, %v483, -inf
      %552 = vmax.xlane.f32.xlu0 %v551
      %v553 = vpop.xlane.xlu0 %552
      %v554 = vsel %vm535, %v521, -inf
      %555 = vmax.xlane.f32.xlu0 %v554
      %v556 = vpop.xlane.xlu0 %555
      %v557 = vsel %vm535, %v524, -inf
      %558 = vmax.xlane.f32.xlu0 %v557
      %v559 = vpop.xlane.xlu0 %558
      %v560 = vmax.f32 %v527, %v538
      %v561 = vmax.f32 %v528, %v541
      %v562 = vmax.f32 %v529, %v544
      %v563 = vmax.f32 %v530, %v547
      %v564 = vmax.f32 %v531, %v550
      %v565 = vmax.f32 %v532, %v553
      %v566 = vmax.f32 %v533, %v556
      %v567 = vmax.f32 %v534, %v559
      %v568 = vsub.f32 %v527, %v560
      %v569 = vsub.f32 %v528, %v561
      %v570 = vsub.f32 %v529, %v562
      %v571 = vsub.f32 %v530, %v563
      %v572 = vsub.f32 %v531, %v564
      %v573 = vsub.f32 %v532, %v565
      %v574 = vsub.f32 %v533, %v566
      %v575 = vsub.f32 %v534, %v567
      %v576 = vmul.f32 %v568, 1.442695
      %v577 = vpow.pop %v576
      %v578 = vmul.f32 %v569, 1.442695
      %v579 = vpow.pop %v578
      %v580 = vmul.f32 %v570, 1.442695
      %v581 = vpow.pop %v580
      %v582 = vmul.f32 %v571, 1.442695
      %v583 = vpow.pop %v582
      %v584 = vmul.f32 %v572, 1.442695
      %v585 = vpow.pop %v584
      %v586 = vmul.f32 %v573, 1.442695
      %v587 = vpow.pop %v586
      %v588 = vmul.f32 %v574, 1.442695
      %v589 = vpow.pop %v588
      %v590 = vmul.f32 %v575, 1.442695
      %v591 = vpow.pop %v590
      %593 = vset.pattern.permute.xlu0 0
      %594 = vperm.xlu0 %593, %v560
      %v595 = vpop.permute.xlu0 %594
      %598 = vset.pattern.permute.xlu0 0
      %599 = vperm.xlu0 %598, %v561
      %v600 = vpop.permute.xlu0 %599
      %603 = vset.pattern.permute.xlu0 0
      %604 = vperm.xlu0 %603, %v562
      %v605 = vpop.permute.xlu0 %604
      %608 = vset.pattern.permute.xlu0 0
      %609 = vperm.xlu0 %608, %v563
      %v610 = vpop.permute.xlu0 %609
      %613 = vset.pattern.permute.xlu0 0
      %614 = vperm.xlu0 %613, %v564
      %v615 = vpop.permute.xlu0 %614
      %618 = vset.pattern.permute.xlu0 0
      %619 = vperm.xlu0 %618, %v565
      %v620 = vpop.permute.xlu0 %619
      %623 = vset.pattern.permute.xlu0 0
      %624 = vperm.xlu0 %623, %v566
      %v625 = vpop.permute.xlu0 %624
      %628 = vset.pattern.permute.xlu0 0
      %629 = vperm.xlu0 %628, %v567
      %v630 = vpop.permute.xlu0 %629
      %v632 = vsub.f32 %v398, %v595
      %v633 = vsub.f32 %v401, %v600
      %v634 = vsub.f32 %v439, %v605
      %v635 = vsub.f32 %v442, %v610
      %v636 = vsub.f32 %v480, %v615
      %v637 = vsub.f32 %v483, %v620
      %v638 = vsub.f32 %v521, %v625
      %v639 = vsub.f32 %v524, %v630
      %v640 = vmul.f32 %v632, 1.442695
      %v641 = vpow.pop %v640
      %v642 = vmul.f32 %v633, 1.442695
      %v643 = vpow.pop %v642
      %v644 = vmul.f32 %v634, 1.442695
      %v645 = vpow.pop %v644
      %v646 = vmul.f32 %v635, 1.442695
      %v647 = vpow.pop %v646
      %v648 = vmul.f32 %v636, 1.442695
      %v649 = vpow.pop %v648
      %v650 = vmul.f32 %v637, 1.442695
      %v651 = vpow.pop %v650
      %v652 = vmul.f32 %v638, 1.442695
      %v653 = vpow.pop %v652
      %v654 = vmul.f32 %v639, 1.442695
      %v655 = vpow.pop %v654
      %v656 = vld [vmem:[#allocation3] sm:$0xff]
      %v657 = vld [vmem:[#allocation3 + $0x8] sm:$0xff]
      %v658 = vld [vmem:[#allocation3 + $0x10] sm:$0xff]
      %v659 = vld [vmem:[#allocation3 + $0x18] sm:$0xff]
      %v660 = vld [vmem:[#allocation3 + $0x20] sm:$0xff]
      %v661 = vld [vmem:[#allocation3 + $0x28] sm:$0xff]
      %v662 = vld [vmem:[#allocation3 + $0x30] sm:$0xff]
      %v663 = vld [vmem:[#allocation3 + $0x38] sm:$0xff]
      %v664 = vmul.f32 %v577, %v656
      %v665 = vmul.f32 %v579, %v657
      %v666 = vmul.f32 %v581, %v658
      %v667 = vmul.f32 %v583, %v659
      %v668 = vmul.f32 %v585, %v660
      %v669 = vmul.f32 %v587, %v661
      %v670 = vmul.f32 %v589, %v662
      %v671 = vmul.f32 %v591, %v663
      %v672 = vsel %vm535, %v641, 0.0
      %673 = vadd.xlane.f32.xlu0 %v672
      %v674 = vpop.xlane.xlu0 %673
      %v675 = vsel %vm535, %v643, 0.0
      %676 = vadd.xlane.f32.xlu0 %v675
      %v677 = vpop.xlane.xlu0 %676
      %v678 = vsel %vm535, %v645, 0.0
      %679 = vadd.xlane.f32.xlu0 %v678
      %v680 = vpop.xlane.xlu0 %679
      %v681 = vsel %vm535, %v647, 0.0
      %682 = vadd.xlane.f32.xlu0 %v681
      %v683 = vpop.xlane.xlu0 %682
      %v684 = vsel %vm535, %v649, 0.0
      %685 = vadd.xlane.f32.xlu0 %v684
      %v686 = vpop.xlane.xlu0 %685
      %v687 = vsel %vm535, %v651, 0.0
      %688 = vadd.xlane.f32.xlu0 %v687
      %v689 = vpop.xlane.xlu0 %688
      %v690 = vsel %vm535, %v653, 0.0
      %691 = vadd.xlane.f32.xlu0 %v690
      %v692 = vpop.xlane.xlu0 %691
      %v693 = vsel %vm535, %v655, 0.0
      %694 = vadd.xlane.f32.xlu0 %v693
      %v695 = vpop.xlane.xlu0 %694
      %v696 = vadd.f32 %v664, %v674
      %v697 = vadd.f32 %v665, %v677
      %v698 = vadd.f32 %v666, %v680
      %v699 = vadd.f32 %v667, %v683
      %v700 = vadd.f32 %v668, %v686
      %v701 = vadd.f32 %v669, %v689
      %v702 = vadd.f32 %v670, %v692
      %v703 = vadd.f32 %v671, %v695
      %vm704 = vcmask 7168
      %705 = vst.msk [vmem:[#allocation3] sm:$0xff] %vm704, %v696
      %706 = vst.msk [vmem:[#allocation3 + $0x8] sm:$0xff] %vm704, %v697
      %707 = vst.msk [vmem:[#allocation3 + $0x10] sm:$0xff] %vm704, %v698
      %708 = vst.msk [vmem:[#allocation3 + $0x18] sm:$0xff] %vm704, %v699
      %709 = vst.msk [vmem:[#allocation3 + $0x20] sm:$0xff] %vm704, %v700
      %710 = vst.msk [vmem:[#allocation3 + $0x28] sm:$0xff] %vm704, %v701
      %711 = vst.msk [vmem:[#allocation3 + $0x30] sm:$0xff] %vm704, %v702
      %712 = vst.msk [vmem:[#allocation3 + $0x38] sm:$0xff] %vm704, %v703
      %v713 = vpack.c.bf16 %v643, %v641
      %v714 = vpack.c.bf16 %v647, %v645
      %v715 = vpack.c.bf16 %v651, %v649
      %v716 = vpack.c.bf16 %v655, %v653
      %v718 = vsel %vm535, %v713, 0
      %720 = vmatprep.subr.bf16.mxu0 0
      %721 = vmatpush1.bf16.msra.mxu0 %v359
      %722 = vmatprep.subr.bf16.mxu0 0
      %723 = vmatpush1.bf16.msra.mxu0 0
      %724 = vmatprep.subr.bf16.mxu0 0
      %725 = vmatpush1.bf16.msra.mxu0 0
      %726 = vmatprep.subr.bf16.mxu0 0
      %727 = vmatpush1.bf16.msra.mxu0 0
      %728 = vmatprep.subr.bf16.mxu0 0
      %729 = vmatpush1.bf16.msra.mxu0 0
      %730 = vmatprep.subr.bf16.mxu0 0
      %731 = vmatpush1.bf16.msra.mxu0 0
      %732 = vmatprep.subr.bf16.mxu0 0
      %733 = vmatpush1.bf16.msra.mxu0 0
      %734 = vmatprep.subr.bf16.mxu0 0
      %735 = vmatpush1.bf16.msra.mxu0 0
      %736 = vmatprep.subr.bf16.mxu0 0
      %737 = vmatpush1.bf16.msra.mxu0 0
      %738 = vmatprep.subr.bf16.mxu0 0
      %739 = vmatpush1.bf16.msra.mxu0 0
      %740 = vmatprep.subr.bf16.mxu0 0
      %741 = vmatpush1.bf16.msra.mxu0 0
      %742 = vmatprep.subr.bf16.mxu0 0
      %743 = vmatpush1.bf16.msra.mxu0 0
      %744 = vmatprep.subr.bf16.mxu0 0
      %745 = vmatpush1.bf16.msra.mxu0 0
      %746 = vmatprep.subr.bf16.mxu0 0
      %747 = vmatpush1.bf16.msra.mxu0 0
      %748 = vmatprep.subr.bf16.mxu0 0
      %749 = vmatpush1.bf16.msra.mxu0 0
      %750 = vmatprep.subr.bf16.mxu0 0
      %751 = vmatpush1.bf16.msra.mxu0 0
      %752 = vmatprep.mubr.bf16.mxu0 0
      %753 = vmatmul.mubr.bf16.gmra.mrb[0].mxu0 %v718
      %v754 = vpop.f32.mrb[0].mxu0
      %v755 = vadd.f32 0.0, %v754
      %v756 = vpop.f32.mrb[0].mxu0
      %v757 = vpop.f32.mrb[0].mxu0
      %v758 = vadd.f32 0.0, %v757
      %v759 = vpop.f32.mrb[0].mxu0
      %760 = vdwg.mxu0
      %v762 = vsel %vm535, %v714, 0
      %764 = vmatprep.subr.bf16.mxu0 0
      %765 = vmatpush1.bf16.msra.mxu0 %v360
      %766 = vmatprep.subr.bf16.mxu0 0
      %767 = vmatpush1.bf16.msra.mxu0 0
      %768 = vmatprep.subr.bf16.mxu0 0
      %769 = vmatpush1.bf16.msra.mxu0 0
      %770 = vmatprep.subr.bf16.mxu0 0
      %771 = vmatpush1.bf16.msra.mxu0 0
      %772 = vmatprep.subr.bf16.mxu0 0
      %773 = vmatpush1.bf16.msra.mxu0 0
      %774 = vmatprep.subr.bf16.mxu0 0
      %775 = vmatpush1.bf16.msra.mxu0 0
      %776 = vmatprep.subr.bf16.mxu0 0
      %777 = vmatpush1.bf16.msra.mxu0 0
      %778 = vmatprep.subr.bf16.mxu0 0
      %779 = vmatpush1.bf16.msra.mxu0 0
      %780 = vmatprep.subr.bf16.mxu0 0
      %781 = vmatpush1.bf16.msra.mxu0 0
      %782 = vmatprep.subr.bf16.mxu0 0
      %783 = vmatpush1.bf16.msra.mxu0 0
      %784 = vmatprep.subr.bf16.mxu0 0
      %785 = vmatpush1.bf16.msra.mxu0 0
      %786 = vmatprep.subr.bf16.mxu0 0
      %787 = vmatpush1.bf16.msra.mxu0 0
      %788 = vmatprep.subr.bf16.mxu0 0
      %789 = vmatpush1.bf16.msra.mxu0 0
      %790 = vmatprep.subr.bf16.mxu0 0
      %791 = vmatpush1.bf16.msra.mxu0 0
      %792 = vmatprep.subr.bf16.mxu0 0
      %793 = vmatpush1.bf16.msra.mxu0 0
      %794 = vmatprep.subr.bf16.mxu0 0
      %795 = vmatpush1.bf16.msra.mxu0 0
      %796 = vmatprep.mubr.bf16.mxu0 0
      %797 = vmatmul.mubr.bf16.gmra.mrb[0].mxu0 %v762
      %v798 = vpop.f32.mrb[0].mxu0
      %v799 = vadd.f32 0.0, %v798
      %v800 = vpop.f32.mrb[0].mxu0
      %v801 = vpop.f32.mrb[0].mxu0
      %v802 = vadd.f32 0.0, %v801
      %v803 = vpop.f32.mrb[0].mxu0
      %804 = vdwg.mxu0
      %v806 = vsel %vm535, %v715, 0
      %808 = vmatprep.subr.bf16.mxu0 0
      %809 = vmatpush1.bf16.msra.mxu0 %v361
      %810 = vmatprep.subr.bf16.mxu0 0
      %811 = vmatpush1.bf16.msra.mxu0 0
      %812 = vmatprep.subr.bf16.mxu0 0
      %813 = vmatpush1.bf16.msra.mxu0 0
      %814 = vmatprep.subr.bf16.mxu0 0
      %815 = vmatpush1.bf16.msra.mxu0 0
      %816 = vmatprep.subr.bf16.mxu0 0
      %817 = vmatpush1.bf16.msra.mxu0 0
      %818 = vmatprep.subr.bf16.mxu0 0
      %819 = vmatpush1.bf16.msra.mxu0 0
      %820 = vmatprep.subr.bf16.mxu0 0
      %821 = vmatpush1.bf16.msra.mxu0 0
      %822 = vmatprep.subr.bf16.mxu0 0
      %823 = vmatpush1.bf16.msra.mxu0 0
      %824 = vmatprep.subr.bf16.mxu0 0
      %825 = vmatpush1.bf16.msra.mxu0 0
      %826 = vmatprep.subr.bf16.mxu0 0
      %827 = vmatpush1.bf16.msra.mxu0 0
      %828 = vmatprep.subr.bf16.mxu0 0
      %829 = vmatpush1.bf16.msra.mxu0 0
      %830 = vmatprep.subr.bf16.mxu0 0
      %831 = vmatpush1.bf16.msra.mxu0 0
      %832 = vmatprep.subr.bf16.mxu0 0
      %833 = vmatpush1.bf16.msra.mxu0 0
      %834 = vmatprep.subr.bf16.mxu0 0
      %835 = vmatpush1.bf16.msra.mxu0 0
      %836 = vmatprep.subr.bf16.mxu0 0
      %837 = vmatpush1.bf16.msra.mxu0 0
      %838 = vmatprep.subr.bf16.mxu0 0
      %839 = vmatpush1.bf16.msra.mxu0 0
      %840 = vmatprep.mubr.bf16.mxu0 0
      %841 = vmatmul.mubr.bf16.gmra.mrb[0].mxu0 %v806
      %v842 = vpop.f32.mrb[0].mxu0
      %v843 = vadd.f32 0.0, %v842
      %v844 = vpop.f32.mrb[0].mxu0
      %v845 = vpop.f32.mrb[0].mxu0
      %v846 = vadd.f32 0.0, %v845
      %v847 = vpop.f32.mrb[0].mxu0
      %848 = vdwg.mxu0
      %v850 = vsel %vm535, %v716, 0
      %852 = vmatprep.subr.bf16.mxu0 0
      %853 = vmatpush1.bf16.msra.mxu0 %v362
      %854 = vmatprep.subr.bf16.mxu0 0
      %855 = vmatpush1.bf16.msra.mxu0 0
      %856 = vmatprep.subr.bf16.mxu0 0
      %857 = vmatpush1.bf16.msra.mxu0 0
      %858 = vmatprep.subr.bf16.mxu0 0
      %859 = vmatpush1.bf16.msra.mxu0 0
      %860 = vmatprep.subr.bf16.mxu0 0
      %861 = vmatpush1.bf16.msra.mxu0 0
      %862 = vmatprep.subr.bf16.mxu0 0
      %863 = vmatpush1.bf16.msra.mxu0 0
      %864 = vmatprep.subr.bf16.mxu0 0
      %865 = vmatpush1.bf16.msra.mxu0 0
      %866 = vmatprep.subr.bf16.mxu0 0
      %867 = vmatpush1.bf16.msra.mxu0 0
      %868 = vmatprep.subr.bf16.mxu0 0
      %869 = vmatpush1.bf16.msra.mxu0 0
      %870 = vmatprep.subr.bf16.mxu0 0
      %871 = vmatpush1.bf16.msra.mxu0 0
      %872 = vmatprep.subr.bf16.mxu0 0
      %873 = vmatpush1.bf16.msra.mxu0 0
      %874 = vmatprep.subr.bf16.mxu0 0
      %875 = vmatpush1.bf16.msra.mxu0 0
      %876 = vmatprep.subr.bf16.mxu0 0
      %877 = vmatpush1.bf16.msra.mxu0 0
      %878 = vmatprep.subr.bf16.mxu0 0
      %879 = vmatpush1.bf16.msra.mxu0 0
      %880 = vmatprep.subr.bf16.mxu0 0
      %881 = vmatpush1.bf16.msra.mxu0 0
      %882 = vmatprep.subr.bf16.mxu0 0
      %883 = vmatpush1.bf16.msra.mxu0 0
      %884 = vmatprep.mubr.bf16.mxu0 0
      %885 = vmatmul.mubr.bf16.gmra.mrb[0].mxu0 %v850
      %v886 = vpop.f32.mrb[0].mxu0
      %v887 = vadd.f32 0.0, %v886
      %v888 = vpop.f32.mrb[0].mxu0
      %v889 = vpop.f32.mrb[0].mxu0
      %v890 = vadd.f32 0.0, %v889
      %v891 = vpop.f32.mrb[0].mxu0
      %892 = vdwg.mxu0
      %v893 = vld [vmem:[#allocation4] sm:$0xff]
      %v894 = vld [vmem:[#allocation4 + $0x8] sm:$0xff]
      %v895 = vld [vmem:[#allocation4 + $0x10] sm:$0xff]
      %v896 = vld [vmem:[#allocation4 + $0x18] sm:$0xff]
      %v897 = vld [vmem:[#allocation4 + $0x20] sm:$0xff]
      %v898 = vld [vmem:[#allocation4 + $0x28] sm:$0xff]
      %v899 = vld [vmem:[#allocation4 + $0x30] sm:$0xff]
      %v900 = vld [vmem:[#allocation4 + $0x38] sm:$0xff]
      %902 = vset.pattern.permute.xlu0 0
      %903 = vperm.xlu0 %902, %v577
      %v904 = vpop.permute.xlu0 %903
      %907 = vset.pattern.permute.xlu0 0
      %908 = vperm.xlu0 %907, %v579
      %v909 = vpop.permute.xlu0 %908
      %912 = vset.pattern.permute.xlu0 0
      %913 = vperm.xlu0 %912, %v581
      %v914 = vpop.permute.xlu0 %913
      %917 = vset.pattern.permute.xlu0 0
      %918 = vperm.xlu0 %917, %v583
      %v919 = vpop.permute.xlu0 %918
      %922 = vset.pattern.permute.xlu0 0
      %923 = vperm.xlu0 %922, %v585
      %v924 = vpop.permute.xlu0 %923
      %927 = vset.pattern.permute.xlu0 0
      %928 = vperm.xlu0 %927, %v587
      %v929 = vpop.permute.xlu0 %928
      %932 = vset.pattern.permute.xlu0 0
      %933 = vperm.xlu0 %932, %v589
      %v934 = vpop.permute.xlu0 %933
      %937 = vset.pattern.permute.xlu0 0
      %938 = vperm.xlu0 %937, %v591
      %v939 = vpop.permute.xlu0 %938
      %v941 = vmul.f32 %v904, %v893
      %v942 = vmul.f32 %v909, %v894
      %v943 = vmul.f32 %v914, %v895
      %v944 = vmul.f32 %v919, %v896
      %v945 = vmul.f32 %v924, %v897
      %v946 = vmul.f32 %v929, %v898
      %v947 = vmul.f32 %v934, %v899
      %v948 = vmul.f32 %v939, %v900
      %v949 = vadd.f32 %v941, %v755
      %v950 = vadd.f32 %v942, %v758
      %v951 = vadd.f32 %v943, %v799
      %v952 = vadd.f32 %v944, %v802
      %v953 = vadd.f32 %v945, %v843
      %v954 = vadd.f32 %v946, %v846
      %v955 = vadd.f32 %v947, %v887
      %v956 = vadd.f32 %v948, %v890
      %957 = vst [vmem:[#allocation4] sm:$0xff] %v949
      %958 = vst [vmem:[#allocation4 + $0x8] sm:$0xff] %v950
      %959 = vst [vmem:[#allocation4 + $0x10] sm:$0xff] %v951
      %960 = vst [vmem:[#allocation4 + $0x18] sm:$0xff] %v952
      %961 = vst [vmem:[#allocation4 + $0x20] sm:$0xff] %v953
      %962 = vst [vmem:[#allocation4 + $0x28] sm:$0xff] %v954
      %963 = vst [vmem:[#allocation4 + $0x30] sm:$0xff] %v955
      %964 = vst [vmem:[#allocation4 + $0x38] sm:$0xff] %v956
      %965 = vst.msk [vmem:[#allocation2] sm:$0xff] %vm704, %v560
      %966 = vst.msk [vmem:[#allocation2 + $0x8] sm:$0xff] %vm704, %v561
      %967 = vst.msk [vmem:[#allocation2 + $0x10] sm:$0xff] %vm704, %v562
      %968 = vst.msk [vmem:[#allocation2 + $0x18] sm:$0xff] %vm704, %v563
      %969 = vst.msk [vmem:[#allocation2 + $0x20] sm:$0xff] %vm704, %v564
      %970 = vst.msk [vmem:[#allocation2 + $0x28] sm:$0xff] %vm704, %v565
      %971 = vst.msk [vmem:[#allocation2 + $0x30] sm:$0xff] %vm704, %v566
      %972 = vst.msk [vmem:[#allocation2 + $0x38] sm:$0xff] %vm704, %v567
      // Predicated region
      $region37: #{mh_attention.1} parent=31 // pred_check
        %p973 = pneg %p290
      $region38: #{mh_attention.1} parent=31 // pred_check_branch
        %975 = sbr.rel (%p973) target = $region40
      $region39: #{mh_attention.1} parent=31 // pred_region
        %v976 = vld [vmem:[#allocation3] sm:$0xff]
        %v977 = vld [vmem:[#allocation3 + $0x8] sm:$0xff]
        %v978 = vld [vmem:[#allocation3 + $0x10] sm:$0xff]
        %v979 = vld [vmem:[#allocation3 + $0x18] sm:$0xff]
        %v980 = vld [vmem:[#allocation3 + $0x20] sm:$0xff]
        %v981 = vld [vmem:[#allocation3 + $0x28] sm:$0xff]
        %v982 = vld [vmem:[#allocation3 + $0x30] sm:$0xff]
        %v983 = vld [vmem:[#allocation3 + $0x38] sm:$0xff]
        %vm984 = vcmp.eq.f32.partialorder %v976, 0.0
        %vm985 = vcmp.eq.f32.partialorder %v977, 0.0
        %vm986 = vcmp.eq.f32.partialorder %v978, 0.0
        %vm987 = vcmp.eq.f32.partialorder %v979, 0.0
        %vm988 = vcmp.eq.f32.partialorder %v980, 0.0
        %vm989 = vcmp.eq.f32.partialorder %v981, 0.0
        %vm990 = vcmp.eq.f32.partialorder %v982, 0.0
        %vm991 = vcmp.eq.f32.partialorder %v983, 0.0
        %v992 = vsel %vm984, 1.0, %v976
        %v993 = vsel %vm985, 1.0, %v977
        %v994 = vsel %vm986, 1.0, %v978
        %v995 = vsel %vm987, 1.0, %v979
        %v996 = vsel %vm988, 1.0, %v980
        %v997 = vsel %vm989, 1.0, %v981
        %v998 = vsel %vm990, 1.0, %v982
        %v999 = vsel %vm991, 1.0, %v983
        %v1000 = vld [vmem:[#allocation4] sm:$0xff]
        %v1001 = vld [vmem:[#allocation4 + $0x8] sm:$0xff]
        %v1002 = vld [vmem:[#allocation4 + $0x10] sm:$0xff]
        %v1003 = vld [vmem:[#allocation4 + $0x18] sm:$0xff]
        %v1004 = vld [vmem:[#allocation4 + $0x20] sm:$0xff]
        %v1005 = vld [vmem:[#allocation4 + $0x28] sm:$0xff]
        %v1006 = vld [vmem:[#allocation4 + $0x30] sm:$0xff]
        %v1007 = vld [vmem:[#allocation4 + $0x38] sm:$0xff]
        %v1008 = vrcp.pop %v992
        %v1009 = vrcp.pop %v993
        %v1010 = vrcp.pop %v994
        %v1011 = vrcp.pop %v995
        %v1012 = vrcp.pop %v996
        %v1013 = vrcp.pop %v997
        %v1014 = vrcp.pop %v998
        %v1015 = vrcp.pop %v999
        %1017 = vset.pattern.permute.xlu0 0
        %1018 = vperm.xlu0 %1017, %v1008
        %v1019 = vpop.permute.xlu0 %1018
        %1022 = vset.pattern.permute.xlu0 0
        %1023 = vperm.xlu0 %1022, %v1009
        %v1024 = vpop.permute.xlu0 %1023
        %1027 = vset.pattern.permute.xlu0 0
        %1028 = vperm.xlu0 %1027, %v1010
        %v1029 = vpop.permute.xlu0 %1028
        %1032 = vset.pattern.permute.xlu0 0
        %1033 = vperm.xlu0 %1032, %v1011
        %v1034 = vpop.permute.xlu0 %1033
        %1037 = vset.pattern.permute.xlu0 0
        %1038 = vperm.xlu0 %1037, %v1012
        %v1039 = vpop.permute.xlu0 %1038
        %1042 = vset.pattern.permute.xlu0 0
        %1043 = vperm.xlu0 %1042, %v1013
        %v1044 = vpop.permute.xlu0 %1043
        %1047 = vset.pattern.permute.xlu0 0
        %1048 = vperm.xlu0 %1047, %v1014
        %v1049 = vpop.permute.xlu0 %1048
        %1052 = vset.pattern.permute.xlu0 0
        %1053 = vperm.xlu0 %1052, %v1015
        %v1054 = vpop.permute.xlu0 %1053
        %v1056 = vmul.f32 %v1000, %v1019
        %v1057 = vmul.f32 %v1001, %v1024
        %v1058 = vmul.f32 %v1002, %v1029
        %v1059 = vmul.f32 %v1003, %v1034
        %v1060 = vmul.f32 %v1004, %v1039
        %v1061 = vmul.f32 %v1005, %v1044
        %v1062 = vmul.f32 %v1006, %v1049
        %v1063 = vmul.f32 %v1007, %v1054
        %1064 = vst [vmem:[%s287] sm:$0xff] %v1056
        %1065 = vst [vmem:[%s287 + $0x8] sm:$0xff] %v1057
        %1066 = vst [vmem:[%s287 + $0x10] sm:$0xff] %v1058
        %1067 = vst [vmem:[%s287 + $0x18] sm:$0xff] %v1059
        %1068 = vst [vmem:[%s287 + $0x20] sm:$0xff] %v1060
        %1069 = vst [vmem:[%s287 + $0x28] sm:$0xff] %v1061
        %1070 = vst [vmem:[%s287 + $0x30] sm:$0xff] %v1062
        %1071 = vst [vmem:[%s287 + $0x38] sm:$0xff] %v1063
      $region40: #{mh_attention.1} parent=31 // pred_fallthru
        _
      %s1072 = smul.u32 2, %s20
      %p1073 = scmp.lt.s32.totalorder %s19, 1
      %s1074 = scalar_select %p1073, %s19, 1
      %p1075 = scmp.lt.s32.totalorder %s1072, 1
      %s1076 = scalar_select %p1075, %s1072, 1
      %s1077 = smul.addr %s1074, 8
      %s1078 = sadd.s32 %s1076, %s1077
      %s1079 = smul.addr %s1078, 8
      %s1080 = scalar_lea.vmem %s3, %s1079
      // Predicated region
      $region41: #{mh_attention.1} parent=31 // pred_check
        %p1081 = pneg %p137
      $region42: #{mh_attention.1} parent=31 // pred_check_branch
        %1083 = sbr.rel (%p1081) target = $region44
      $region43: #{mh_attention.1} parent=31 // pred_region
        %s1084 = smul.u32 2, %s20
      $region44: #{mh_attention.1} parent=31 // pred_fallthru
        _
    $region32: #{mh_attention.1} parent=5 // pred_fallthru
      _
    %p1085 = scmp.le.s32.totalorder 2, %s9
    // Predicated region
    $region45: #{mh_attention.1} parent=5 // pred_check
      %p1086 = pneg %p1085
    $region46: #{mh_attention.1} parent=5 // pred_check_branch
      %1088 = sbr.rel (%p1086) target = $region48
    $region47: #{mh_attention.1} parent=5 // pred_region
      %s1089 = ssub.s32 %s9, 2
      // Predicated region
      $region49: #{mh_attention.1} parent=47 // pred_check
        %p1090 = pneg %p143
      $region50: #{mh_attention.1} parent=47 // pred_check_branch
        %1092 = sbr.rel (%p1090) target = $region52
      $region51: #{mh_attention.1} parent=47 // pred_region
        %s1093 = smul.u32 2, %s23
        %p1094 = scmp.lt.s32.totalorder %s22, 1
        %s1095 = scalar_select %p1094, %s22, 1
        %p1096 = scmp.lt.s32.totalorder %s1093, 1
        %s1097 = scalar_select %p1096, %s1093, 1
        %s1098 = smul.addr %s1095, 8
        %s1099 = sadd.s32 %s1097, %s1098
        %s1100 = smul.addr %s1099, 8
        %s1101 = scalar_lea.vmem %s3, %s1100
      $region52: #{mh_attention.1} parent=47 // pred_fallthru
        _
    $region48: #{mh_attention.1} parent=5 // pred_fallthru
      _
  $region6: #{mh_attention.1} parent=0 // loop_footer
    %s13 = sadd.s32 1, %s9
  $region7: #{mh_attention.1} parent=0 // loop_footer_branch
    %8 = sbr.rel target = $region3
  $region8: #{mh_attention.1} parent=0 // loop_exit
    _

</llo_original>
